<compile_context>
chip_gen: v6e
topology: v6e:2x2x1
jax: 0.10.0
libtpu: 0.0.40
codegen_flags: <defaults>
</compile_context>

<pallas_src>
import functools

import jax
import jax.numpy as jnp
import numpy as np
from jax import lax
from jax.experimental import pallas as pl
from jax.experimental.pallas import tpu as pltpu

LANE = 128
SUBLANE = 8


def _round_up(v, m):
    return (v + m - 1) // m * m


# ----------------------------------------------------------------------------
# Pass 1: per-channel running max/min of xx = beta + x^2 @ gamma^T.
# xx is recomputed in pass 2, so it is never written to HBM.
# ----------------------------------------------------------------------------
def stats_kernel(x_ref, gt_ref, b_ref, mx_ref, mn_ref, accmx_ref, accmn_ref,
                 *, valid_p, tile_p, needs_mask):
    i = pl.program_id(0)

    @pl.when(i == 0)
    def _():
        accmx_ref[...] = jnp.full(accmx_ref.shape, -jnp.inf, accmx_ref.dtype)
        accmn_ref[...] = jnp.full(accmn_ref.shape, jnp.inf, accmn_ref.dtype)

    x = x_ref[...]                              # (tile_p, Cp)
    x2 = x * x
    xx = jnp.dot(x2, gt_ref[...], preferred_element_type=jnp.float32) + b_ref[...]

    if needs_mask:
        # Mask rows that are pure P-padding (global row index >= valid_p).
        row = lax.broadcasted_iota(jnp.int32, xx.shape, 0) + i * tile_p
        valid = row < valid_p
        xx_max = jnp.where(valid, xx, -jnp.inf)
        xx_min = jnp.where(valid, xx, jnp.inf)
    else:
        xx_max = xx
        xx_min = xx

    # Element-wise (VPU-only) accumulation into an (8, Cp) scratch; the
    # cross-sublane collapse happens once, on the last grid step.
    cp = xx.shape[-1]
    xx_max = xx_max.reshape(tile_p // SUBLANE, SUBLANE, cp)
    xx_min = xx_min.reshape(tile_p // SUBLANE, SUBLANE, cp)
    accmx_ref[...] = jnp.maximum(accmx_ref[...], jnp.max(xx_max, axis=0))
    accmn_ref[...] = jnp.minimum(accmn_ref[...], jnp.min(xx_min, axis=0))

    @pl.when(i == pl.num_programs(0) - 1)
    def _():
        mx_ref[...] = jnp.max(accmx_ref[...], axis=0, keepdims=True)
        mn_ref[...] = jnp.min(accmn_ref[...], axis=0, keepdims=True)


# ----------------------------------------------------------------------------
# Pass 2: recompute xx, LSQ+ fake-quant, rsqrt (or sqrt), output scaling.
# ----------------------------------------------------------------------------
def quant_kernel(x_ref, gt_ref, b_ref, mx_ref, mn_ref, s1_ref, o_ref,
                 *, qn, qp, inverse):
    mx = mx_ref[...]                            # (1, Cp)
    mn = mn_ref[...]                            # (1, Cp)
    qscl = (mx - mn) * (0.9 / (qp - qn))
    qoff = mn * 0.9 - qn * qscl
    inv_qscl = 1.0 / qscl                       # exact reciprocal of a (1,Cp) vector

    x = x_ref[...]                              # (tile_p, Cp)
    x2 = x * x
    xx = jnp.dot(x2, gt_ref[...], preferred_element_type=jnp.float32) + b_ref[...]

    x_hat = jnp.clip(jnp.round((xx - qoff) * inv_qscl), qn, qp)
    xq = x_hat * qscl + qoff

    if inverse:
        norm = jnp.sqrt(xq)
    else:
        norm = lax.rsqrt(xq)

    o_ref[...] = s1_ref[...] * x * norm


# ----------------------------------------------------------------------------
# Wrapper
# ----------------------------------------------------------------------------
def gdn_x2q_forward(x_nchw, gamma, beta, s1, *, num=256, inverse=False,
                    tile_p=512):
    N, C, H, W = x_nchw.shape
    P = N * H * W
    qn, qp = 0.0, float(num - 1)

    # Tile/padding geometry.
    tile_p = max(SUBLANE, _round_up(min(tile_p, _round_up(P, SUBLANE)), SUBLANE))
    Pp = _round_up(P, tile_p)
    Cp = _round_up(C, LANE)
    needs_mask = Pp != P

    # NCHW -> channels-last slab (Pp, Cp), f32.
    x = jnp.transpose(x_nchw, (0, 2, 3, 1)).reshape(P, C).astype(jnp.float32)
    x = jnp.pad(x, ((0, Pp - P), (0, Cp - C)))

    # gamma^T hoisted to the wrapper (MXU RHS stays stationary in the kernel).
    gammaT = jnp.pad(gamma.astype(jnp.float32).T, ((0, Cp - C), (0, Cp - C)))
    # Pad beta with 1.0 so padded channels stay strictly positive (no NaNs);
    # padded channels/rows are sliced off at the end anyway.
    beta2d = jnp.pad(beta.astype(jnp.float32).reshape(1, C),
                     ((0, 0), (0, Cp - C)), constant_values=1.0)
    s1_2d = jnp.pad(s1.astype(jnp.float32).reshape(1, C), ((0, 0), (0, Cp - C)))

    grid = (Pp // tile_p,)

    # Rough double-buffered working set; raise the scoped VMEM limit explicitly
    # (v5e default is 16 MiB) while staying well under v7x's 64 MiB physical.
    vmem_ws = 4 * (4 * tile_p * Cp + Cp * Cp + 32 * Cp)
    vmem_limit = int(min(max(2 * vmem_ws, 16 * 1024 * 1024), 48 * 1024 * 1024))

    # Pass 1: per-channel amax/amin of xx (no xx written to HBM).
    mx, mn = pl.pallas_call(
        functools.partial(stats_kernel, valid_p=P, tile_p=tile_p,
                          needs_mask=needs_mask),
        out_shape=(
            jax.ShapeDtypeStruct((1, Cp), jnp.float32),
            jax.ShapeDtypeStruct((1, Cp), jnp.float32),
        ),
        grid_spec=pltpu.PrefetchScalarGridSpec(
            num_scalar_prefetch=0,
            grid=grid,
            in_specs=[
                pl.BlockSpec((tile_p, Cp), lambda i: (i, 0)),
                pl.BlockSpec((Cp, Cp), lambda i: (0, 0)),
                pl.BlockSpec((1, Cp), lambda i: (0, 0)),
            ],
            out_specs=[
                pl.BlockSpec((1, Cp), lambda i: (0, 0)),   # max (resident)
                pl.BlockSpec((1, Cp), lambda i: (0, 0)),   # min (resident)
            ],
            scratch_shapes=[
                pltpu.VMEM((SUBLANE, Cp), jnp.float32),
                pltpu.VMEM((SUBLANE, Cp), jnp.float32),
            ],
        ),
        compiler_params=pltpu.CompilerParams(
            dimension_semantics=("arbitrary",),
            vmem_limit_bytes=vmem_limit),
    )(x, gammaT, beta2d)

    # Pass 2: recompute xx, LSQ+ quantization, rsqrt, output scaling.
    out_flat = pl.pallas_call(
        functools.partial(quant_kernel, qn=qn, qp=qp, inverse=inverse),
        out_shape=jax.ShapeDtypeStruct((Pp, Cp), jnp.float32),
        grid_spec=pltpu.PrefetchScalarGridSpec(
            num_scalar_prefetch=0,
            grid=grid,
            in_specs=[
                pl.BlockSpec((tile_p, Cp), lambda i: (i, 0)),
                pl.BlockSpec((Cp, Cp), lambda i: (0, 0)),
                pl.BlockSpec((1, Cp), lambda i: (0, 0)),
                pl.BlockSpec((1, Cp), lambda i: (0, 0)),
                pl.BlockSpec((1, Cp), lambda i: (0, 0)),
                pl.BlockSpec((1, Cp), lambda i: (0, 0)),
            ],
            out_specs=pl.BlockSpec((tile_p, Cp), lambda i: (i, 0)),
        ),
        compiler_params=pltpu.CompilerParams(
            dimension_semantics=("parallel",),
            vmem_limit_bytes=vmem_limit),
    )(x, gammaT, beta2d, mx, mn, s1_2d)

    # Strip padding, (P, C) -> NCHW.
    out = out_flat[:P, :C].reshape(N, H, W, C).transpose(0, 3, 1, 2)
    return out


# ----------------------------------------------------------------------------
# Parameter setup matching GDN.__init__ (NonNegativeParametrizer reparam).
# ----------------------------------------------------------------------------
def _nonneg_init(x, reparam_offset=2.0 ** -18):
    pedestal = reparam_offset ** 2
    return jnp.sqrt(jnp.maximum(x + pedestal, pedestal))


def _nonneg_forward(x, minimum=0.0, reparam_offset=2.0 ** -18):
    pedestal = reparam_offset ** 2
    bound = (minimum + pedestal) ** 0.5
    out = jnp.maximum(x, bound)
    return out * out - pedestal


def make_params(C, beta_min=1e-6, gamma_init=0.1):
    beta_param = _nonneg_init(jnp.ones((C,), jnp.float32))
    gamma_param = _nonneg_init(gamma_init * jnp.eye(C, dtype=jnp.float32))
    beta = _nonneg_forward(beta_param, minimum=beta_min)           # ~ones
    gamma = _nonneg_forward(gamma_param, minimum=0.0)              # ~0.1*eye
    s1 = jnp.ones((C,), jnp.float32)
    return gamma, beta, s1


# ----------------------------------------------------------------------------
# Pure-JAX reference (same math as the PyTorch module, NCHW).
# ----------------------------------------------------------------------------
def ref_forward(x, gamma, beta, s1, num=256, inverse=False):
    qn, qp = 0.0, float(num - 1)
    x2 = x * x
    xx = jnp.einsum("nchw,oc->nohw", x2, gamma) + beta.reshape(1, -1, 1, 1)
    mx = xx.max(axis=(0, 2, 3)).reshape(1, -1, 1, 1)
    mn = xx.min(axis=(0, 2, 3)).reshape(1, -1, 1, 1)
    qscl = (mx - mn) / (qp - qn) * 0.9
    qoff = mn * 0.9 - qn * qscl
    x_hat = jnp.clip(jnp.round((xx - qoff) / qscl), qn, qp)
    xq = x_hat * qscl + qoff
    norm = jnp.sqrt(xq) if inverse else lax.rsqrt(xq)
    return s1.reshape(1, -1, 1, 1) * x * norm


if __name__ == "__main__":
    N, C, H, W = 2, 4, 16, 16
    key = jax.random.PRNGKey(0)
    x = jax.random.normal(key, (N, C, H, W), dtype=jnp.float32)

    gamma, beta, s1 = make_params(C)

    out = gdn_x2q_forward(x, gamma, beta, s1, num=256, inverse=False)
    out = jax.block_until_ready(out)

    ref = ref_forward(x, gamma, beta, s1, num=256, inverse=False)
    out_np = np.asarray(out)
    ref_np = np.asarray(ref)
    assert out.shape == (N, C, H, W)
    assert np.isfinite(out_np).all(), "non-finite values in output"
    # atol widened slightly: reciprocal-multiply vs divide can flip a quant
    # code by +/-1 for values sitting exactly on a rounding boundary.
    assert np.allclose(out_np, ref_np, rtol=1e-3, atol=2e-2), "mismatch vs reference"

    print("KERNEL_OK")
</pallas_src>

<mosaic_0001>
module attributes {stable_mosaic.version = 11 : i64} {
  func.func @stats_kernel(%arg0: i32, %arg1: memref<512x128xf32, #tpu.memory_space<vmem>>, %arg2: memref<128x128xf32, #tpu.memory_space<vmem>>, %arg3: memref<1x128xf32, #tpu.memory_space<vmem>>, %arg4: memref<1x128xf32, #tpu.memory_space<vmem>>, %arg5: memref<1x128xf32, #tpu.memory_space<vmem>>, %arg6: memref<8x128xf32, #tpu.memory_space<vmem>>, %arg7: memref<8x128xf32, #tpu.memory_space<vmem>>) attributes {dimension_semantics = [#tpu.dimension_semantics<arbitrary>], iteration_bounds = array<i64: 1>, scalar_prefetch = 0 : i64, scratch_operands = 2 : i64, tpu.core_type = #tpu.core_type<tc>, window_params = [{transform_indices = @transform_0, window_bounds = array<i64: 512, 128>}, {pipeline_mode = #tpu.pipeline_mode<synchronous>, transform_indices = @transform_1, window_bounds = array<i64: 128, 128>}, {pipeline_mode = #tpu.pipeline_mode<synchronous>, transform_indices = @transform_2, window_bounds = array<i64: 1, 128>}, {pipeline_mode = #tpu.pipeline_mode<synchronous>, transform_indices = @transform_3, window_bounds = array<i64: 1, 128>}, {pipeline_mode = #tpu.pipeline_mode<synchronous>, transform_indices = @transform_4, window_bounds = array<i64: 1, 128>}]} {
    %c0_i32 = arith.constant 0 : i32
    %0 = arith.cmpi eq, %arg0, %c0_i32 : i32
    %1 = arith.extui %0 : i1 to i32
    %c0_i32_0 = arith.constant 0 : i32
    %2 = arith.cmpi ne, %1, %c0_i32_0 : i32
    scf.if %2 {
      %cst_18 = arith.constant 0xFF800000 : f32
      %23 = vector.broadcast %cst_18 : f32 to vector<8x128xf32>
      %c0_19 = arith.constant 0 : index
      %c0_20 = arith.constant 0 : index
      %24 = vector.load %arg6[%c0_19, %c0_20] : memref<8x128xf32, #tpu.memory_space<vmem>>, vector<8x128xf32>
      tpu.vector_store %arg6[%c0_19, %c0_20], %23 {strides = array<i32>} : memref<8x128xf32, #tpu.memory_space<vmem>>, vector<8x128xf32>,
      %cst_21 = arith.constant 0x7F800000 : f32
      %25 = vector.broadcast %cst_21 : f32 to vector<8x128xf32>
      %c0_22 = arith.constant 0 : index
      %c0_23 = arith.constant 0 : index
      %26 = vector.load %arg7[%c0_22, %c0_23] : memref<8x128xf32, #tpu.memory_space<vmem>>, vector<8x128xf32>
      tpu.vector_store %arg7[%c0_22, %c0_23], %25 {strides = array<i32>} : memref<8x128xf32, #tpu.memory_space<vmem>>, vector<8x128xf32>,
    } else {
    }
    %c0 = arith.constant 0 : index
    %c0_1 = arith.constant 0 : index
    %3 = vector.load %arg1[%c0, %c0_1] : memref<512x128xf32, #tpu.memory_space<vmem>>, vector<512x128xf32>
    %4 = arith.mulf %3, %3 : vector<512x128xf32>
    %c0_2 = arith.constant 0 : index
    %c0_3 = arith.constant 0 : index
    %5 = vector.load %arg2[%c0_2, %c0_3] : memref<128x128xf32, #tpu.memory_space<vmem>>, vector<128x128xf32>
    %cst = arith.constant dense<0.000000e+00> : vector<512x128xf32>
    %6 = tpu.matmul %4, %5, %cst {dimension_numbers = #tpu.dot_dimension_numbers<[1], [0], [0], [1], [0, 0, 1, 1], [], []>} : vector<512x128xf32>, vector<128x128xf32>, vector<512x128xf32> -> vector<512x128xf32>
    %c0_4 = arith.constant 0 : index
    %c0_5 = arith.constant 0 : index
    %7 = vector.load %arg3[%c0_4, %c0_5] : memref<1x128xf32, #tpu.memory_space<vmem>>, vector<1x128xf32>
    %8 = vector.broadcast %7 : vector<1x128xf32> to vector<512x128xf32>
    %9 = arith.addf %6, %8 : vector<512x128xf32>
    %10 = vector.shape_cast %9 : vector<512x128xf32> to vector<64x8x128xf32>
    %11 = vector.shape_cast %9 : vector<512x128xf32> to vector<64x8x128xf32>
    %c0_6 = arith.constant 0 : index
    %c0_7 = arith.constant 0 : index
    %12 = vector.load %arg6[%c0_6, %c0_7] : memref<8x128xf32, #tpu.memory_space<vmem>>, vector<8x128xf32>
    %cst_8 = arith.constant dense<0xFF800000> : vector<8x128xf32>
    %13 = vector.multi_reduction <maximumf>, %10, %cst_8 [0] : vector<64x8x128xf32> to vector<8x128xf32>
    %14 = arith.maximumf %12, %13 : vector<8x128xf32>
    %c0_9 = arith.constant 0 : index
    %c0_10 = arith.constant 0 : index
    %15 = vector.load %arg6[%c0_9, %c0_10] : memref<8x128xf32, #tpu.memory_space<vmem>>, vector<8x128xf32>
    tpu.vector_store %arg6[%c0_9, %c0_10], %14 {strides = array<i32>} : memref<8x128xf32, #tpu.memory_space<vmem>>, vector<8x128xf32>,
    %c0_11 = arith.constant 0 : index
    %c0_12 = arith.constant 0 : index
    %16 = vector.load %arg7[%c0_11, %c0_12] : memref<8x128xf32, #tpu.memory_space<vmem>>, vector<8x128xf32>
    %cst_13 = arith.constant dense<0x7F800000> : vector<8x128xf32>
    %17 = vector.multi_reduction <minimumf>, %11, %cst_13 [0] : vector<64x8x128xf32> to vector<8x128xf32>
    %18 = arith.minimumf %16, %17 : vector<8x128xf32>
    %c0_14 = arith.constant 0 : index
    %c0_15 = arith.constant 0 : index
    %19 = vector.load %arg7[%c0_14, %c0_15] : memref<8x128xf32, #tpu.memory_space<vmem>>, vector<8x128xf32>
    tpu.vector_store %arg7[%c0_14, %c0_15], %18 {strides = array<i32>} : memref<8x128xf32, #tpu.memory_space<vmem>>, vector<8x128xf32>,
    %c0_i32_16 = arith.constant 0 : i32
    %20 = arith.cmpi eq, %arg0, %c0_i32_16 : i32
    %21 = arith.extui %20 : i1 to i32
    %c0_i32_17 = arith.constant 0 : i32
    %22 = arith.cmpi ne, %21, %c0_i32_17 : i32
    scf.if %22 {
      %c0_18 = arith.constant 0 : index
      %c0_19 = arith.constant 0 : index
      %23 = vector.load %arg6[%c0_18, %c0_19] : memref<8x128xf32, #tpu.memory_space<vmem>>, vector<8x128xf32>
      %cst_20 = arith.constant dense<0xFF800000> : vector<128xf32>
      %24 = vector.multi_reduction <maximumf>, %23, %cst_20 [0] : vector<8x128xf32> to vector<128xf32>
      %25 = vector.shape_cast %24 : vector<128xf32> to vector<1x128xf32>
      %c0_21 = arith.constant 0 : index
      %c0_22 = arith.constant 0 : index
      %26 = vector.load %arg4[%c0_21, %c0_22] : memref<1x128xf32, #tpu.memory_space<vmem>>, vector<1x128xf32>
      tpu.vector_store %arg4[%c0_21, %c0_22], %25 {strides = array<i32>} : memref<1x128xf32, #tpu.memory_space<vmem>>, vector<1x128xf32>,
      %c0_23 = arith.constant 0 : index
      %c0_24 = arith.constant 0 : index
      %27 = vector.load %arg7[%c0_23, %c0_24] : memref<8x128xf32, #tpu.memory_space<vmem>>, vector<8x128xf32>
      %cst_25 = arith.constant dense<0x7F800000> : vector<128xf32>
      %28 = vector.multi_reduction <minimumf>, %27, %cst_25 [0] : vector<8x128xf32> to vector<128xf32>
      %29 = vector.shape_cast %28 : vector<128xf32> to vector<1x128xf32>
      %c0_26 = arith.constant 0 : index
      %c0_27 = arith.constant 0 : index
      %30 = vector.load %arg5[%c0_26, %c0_27] : memref<1x128xf32, #tpu.memory_space<vmem>>, vector<1x128xf32>
      tpu.vector_store %arg5[%c0_26, %c0_27], %29 {strides = array<i32>} : memref<1x128xf32, #tpu.memory_space<vmem>>, vector<1x128xf32>,
    } else {
    }
    return
  }
  func.func @transform_0(%arg0: i32) -> (i32, i32) {
    %c0_i32 = arith.constant 0 : i32
    %c0_i32_0 = arith.constant 0 : i32
    return %arg0, %c0_i32 : i32, i32
  }
  func.func @transform_1(%arg0: i32) -> (i32, i32) {
    %c0_i32 = arith.constant 0 : i32
    %c0_i32_0 = arith.constant 0 : i32
    %c0_i32_1 = arith.constant 0 : i32
    return %c0_i32, %c0_i32_0 : i32, i32
  }
  func.func @transform_2(%arg0: i32) -> (i32, i32) {
    %c0_i32 = arith.constant 0 : i32
    %c0_i32_0 = arith.constant 0 : i32
    %c0_i32_1 = arith.constant 0 : i32
    return %c0_i32, %c0_i32_0 : i32, i32
  }
  func.func @transform_3(%arg0: i32) -> (i32, i32) {
    %c0_i32 = arith.constant 0 : i32
    %c0_i32_0 = arith.constant 0 : i32
    %c0_i32_1 = arith.constant 0 : i32
    return %c0_i32, %c0_i32_0 : i32, i32
  }
  func.func @transform_4(%arg0: i32) -> (i32, i32) {
    %c0_i32 = arith.constant 0 : i32
    %c0_i32_0 = arith.constant 0 : i32
    %c0_i32_1 = arith.constant 0 : i32
    return %c0_i32, %c0_i32_0 : i32, i32
  }
}

</mosaic_0001>

<llo_original>
// kernel: tpu_custom_call.1
$region0: #{tpu_custom_call.1}
  #allocation0 [shape = 'u32[]', space=smem, size = 0x4, offset = 0x4, fixed_abs, tag = 'smem constant byte address 0x4 - core index']
  #allocation1 [shape = 'u32[144,128]{1,0:T(1,128)}', space=vmem, size = 0x12000, scoped, tag = 'internal scratch']
  #allocation2 [shape = 'f32[8,128]{1,0:T(8,128)}', space=vmem, size = 0x1000, scoped, tag = 'scratch operand']
  #allocation3 [shape = 'f32[8,128]{1,0:T(8,128)}', space=vmem, size = 0x1000, scoped, tag = 'scratch operand']
  %s0 = inlined_call_operand.hbm [shape: f32[512,128], index: 0, kind: input, shape index: {}]
  %s1 = inlined_call_operand.hbm [shape: f32[128,128], index: 1, kind: input, shape index: {}]
  %s2 = inlined_call_operand.vmem [shape: f32[1,128], index: 2, kind: input, shape index: {}]
  %s3 = inlined_call_operand.hbm [shape: f32[1,128], index: 3, kind: output, shape index: {0}]
  %s4 = inlined_call_operand.hbm [shape: f32[1,128], index: 4, kind: output, shape index: {1}]
  %5 = xla_tuple %s3, %s4
  %s6 = sld [smem:[#allocation0]]
  $region46: #{tpu_custom_call.1} parent=0
    _
  %s8 = ssub.s32 1, %s6
  %s9 = scalar_select 0, %s8, %s6
  $region1: #{tpu_custom_call.1} parent=0
    #allocation4 [shape = 'u8[262144]{0}', space=vmem, size = 0x40000, scoped, tag = 'input window, operand 0, single buffered']
    #allocation5 [shape = 's32[1]{0}', space=sflag, size = 0x4, scoped, tag = 'scoped memory for tpu_custom_call.1']
    #allocation6 [shape = 's32[1]{0}', space=sflag, size = 0x4, scoped, tag = 'scoped memory for tpu_custom_call.1']
    #allocation7 [shape = 'u8[65536]{0}', space=vmem, size = 0x10000, scoped, tag = 'input window, operand 1, single buffered']
    #allocation8 [shape = 's32[1]{0}', space=sflag, size = 0x4, scoped, tag = 'scoped memory for tpu_custom_call.1']
    #allocation9 [shape = 'u8[512]{0}', space=vmem, size = 0x400, scoped, tag = 'output window, operand 0, single buffered']
    #allocation10 [shape = 'u8[512]{0}', space=vmem, size = 0x400, scoped, tag = 'output window, operand 1, single buffered']
    #allocation11 [shape = 's32[1]{0}', space=sflag, size = 0x4, scoped, tag = 'scoped memory for tpu_custom_call.1']
    %10 = vsyncpa [#allocation5], 0
    %11 = vsyncpa [#allocation8], 0
    %12 = vsyncpa [#allocation6], 0
    %13 = vsyncpa [#allocation11], 0
    // Predicated region
    $region2: #{tpu_custom_call.1} parent=1 // pred_check
      _
    $region3: #{tpu_custom_call.1} parent=1 // pred_check_branch
      %15 = sbr.rel (0) target = $region5
    $region4: #{tpu_custom_call.1} parent=1 // pred_region
      %s17 = ssub.s32 8192, 8192
      %18 = vsyncadd [#allocation5], %s17
      %s19 = sshll.u32 [#allocation4], 4
      %s20 = int_to_ptr.vmem [resolvable:$true] %s19
      %25 = dma.hbm_to_vmem [thread:$0]  %s0, 8192, %s20, [#allocation5], 128, 128, 8
    $region5: #{tpu_custom_call.1} parent=1 // pred_fallthru
      _
    // Predicated region
    $region6: #{tpu_custom_call.1} parent=1 // pred_check
      _
    $region7: #{tpu_custom_call.1} parent=1 // pred_check_branch
      %27 = sbr.rel (0) target = $region9
    $region8: #{tpu_custom_call.1} parent=1 // pred_region
      %s29 = ssub.s32 2048, 2048
      %30 = vsyncadd [#allocation8], %s29
      %s31 = sshll.u32 [#allocation7], 4
      %s32 = int_to_ptr.vmem [resolvable:$true] %s31
      %37 = dma.hbm_to_vmem [thread:$0]  %s1, 2048, %s32, [#allocation8], 128, 128, 8
    $region9: #{tpu_custom_call.1} parent=1 // pred_fallthru
      _
    // Predicated region
    $region10: #{tpu_custom_call.1} parent=1 // pred_check
      _
    $region11: #{tpu_custom_call.1} parent=1 // pred_check_branch
      %39 = sbr.rel (0) target = $region13
    $region12: #{tpu_custom_call.1} parent=1 // pred_region
      _
    $region13: #{tpu_custom_call.1} parent=1 // pred_fallthru
      _
    // Predicated region
    $region14: #{tpu_custom_call.1} parent=1 // pred_check
      _
    $region15: #{tpu_custom_call.1} parent=1 // pred_check_branch
      %41 = sbr.rel (0) target = $region17
    $region16: #{tpu_custom_call.1} parent=1 // pred_region
      %42 = dma.done [#allocation5], 8192
    $region17: #{tpu_custom_call.1} parent=1 // pred_fallthru
      _
    // Predicated region
    $region18: #{tpu_custom_call.1} parent=1 // pred_check
      _
    $region19: #{tpu_custom_call.1} parent=1 // pred_check_branch
      %44 = sbr.rel (0) target = $region21
    $region20: #{tpu_custom_call.1} parent=1 // pred_region
      %45 = dma.done [#allocation8], 2048
    $region21: #{tpu_custom_call.1} parent=1 // pred_fallthru
      _
    %p46 = scmp.eq.s32.totalorder 0, 0
    // Predicated region
    $region22: #{tpu_custom_call.1} parent=1 // pred_check
      %p47 = pneg %p46
    $region23: #{tpu_custom_call.1} parent=1 // pred_check_branch
      %49 = sbr.rel (%p47) target = $region25
    $region24: #{tpu_custom_call.1} parent=1 // pred_region
      %50 = vst [vmem:[#allocation2] sm:$0xff] -inf
      %51 = vst [vmem:[#allocation3] sm:$0xff] inf
    $region25: #{tpu_custom_call.1} parent=1 // pred_fallthru
      _
    %v52 = vld [vmem:[#allocation4] sm:$0xff]
    %v53 = vld [vmem:[#allocation4 + $0x8] sm:$0xff]
    %v54 = vld [vmem:[#allocation4 + $0x10] sm:$0xff]
    %v55 = vld [vmem:[#allocation4 + $0x18] sm:$0xff]
    %v56 = vld [vmem:[#allocation4 + $0x20] sm:$0xff]
    %v57 = vld [vmem:[#allocation4 + $0x28] sm:$0xff]
    %v58 = vld [vmem:[#allocation4 + $0x30] sm:$0xff]
    %v59 = vld [vmem:[#allocation4 + $0x38] sm:$0xff]
    %v60 = vld [vmem:[#allocation4 + $0x40] sm:$0xff]
    %v61 = vld [vmem:[#allocation4 + $0x48] sm:$0xff]
    %v62 = vld [vmem:[#allocation4 + $0x50] sm:$0xff]
    %v63 = vld [vmem:[#allocation4 + $0x58] sm:$0xff]
    %v64 = vld [vmem:[#allocation4 + $0x60] sm:$0xff]
    %v65 = vld [vmem:[#allocation4 + $0x68] sm:$0xff]
    %v66 = vld [vmem:[#allocation4 + $0x70] sm:$0xff]
    %v67 = vld [vmem:[#allocation4 + $0x78] sm:$0xff]
    %v68 = vld [vmem:[#allocation4 + $0x80] sm:$0xff]
    %v69 = vld [vmem:[#allocation4 + $0x88] sm:$0xff]
    %v70 = vld [vmem:[#allocation4 + $0x90] sm:$0xff]
    %v71 = vld [vmem:[#allocation4 + $0x98] sm:$0xff]
    %v72 = vld [vmem:[#allocation4 + $0xa0] sm:$0xff]
    %v73 = vld [vmem:[#allocation4 + $0xa8] sm:$0xff]
    %v74 = vld [vmem:[#allocation4 + $0xb0] sm:$0xff]
    %v75 = vld [vmem:[#allocation4 + $0xb8] sm:$0xff]
    %v76 = vld [vmem:[#allocation4 + $0xc0] sm:$0xff]
    %v77 = vld [vmem:[#allocation4 + $0xc8] sm:$0xff]
    %v78 = vld [vmem:[#allocation4 + $0xd0] sm:$0xff]
    %v79 = vld [vmem:[#allocation4 + $0xd8] sm:$0xff]
    %v80 = vld [vmem:[#allocation4 + $0xe0] sm:$0xff]
    %v81 = vld [vmem:[#allocation4 + $0xe8] sm:$0xff]
    %v82 = vld [vmem:[#allocation4 + $0xf0] sm:$0xff]
    %v83 = vld [vmem:[#allocation4 + $0xf8] sm:$0xff]
    %v84 = vld [vmem:[#allocation4 + $0x100] sm:$0xff]
    %v85 = vld [vmem:[#allocation4 + $0x108] sm:$0xff]
    %v86 = vld [vmem:[#allocation4 + $0x110] sm:$0xff]
    %v87 = vld [vmem:[#allocation4 + $0x118] sm:$0xff]
    %v88 = vld [vmem:[#allocation4 + $0x120] sm:$0xff]
    %v89 = vld [vmem:[#allocation4 + $0x128] sm:$0xff]
    %v90 = vld [vmem:[#allocation4 + $0x130] sm:$0xff]
    %v91 = vld [vmem:[#allocation4 + $0x138] sm:$0xff]
    %v92 = vld [vmem:[#allocation4 + $0x140] sm:$0xff]
    %v93 = vld [vmem:[#allocation4 + $0x148] sm:$0xff]
    %v94 = vld [vmem:[#allocation4 + $0x150] sm:$0xff]
    %v95 = vld [vmem:[#allocation4 + $0x158] sm:$0xff]
    %v96 = vld [vmem:[#allocation4 + $0x160] sm:$0xff]
    %v97 = vld [vmem:[#allocation4 + $0x168] sm:$0xff]
    %v98 = vld [vmem:[#allocation4 + $0x170] sm:$0xff]
    %v99 = vld [vmem:[#allocation4 + $0x178] sm:$0xff]
    %v100 = vld [vmem:[#allocation4 + $0x180] sm:$0xff]
    %v101 = vld [vmem:[#allocation4 + $0x188] sm:$0xff]
    %v102 = vld [vmem:[#allocation4 + $0x190] sm:$0xff]
    %v103 = vld [vmem:[#allocation4 + $0x198] sm:$0xff]
    %v104 = vld [vmem:[#allocation4 + $0x1a0] sm:$0xff]
    %v105 = vld [vmem:[#allocation4 + $0x1a8] sm:$0xff]
    %v106 = vld [vmem:[#allocation4 + $0x1b0] sm:$0xff]
    %v107 = vld [vmem:[#allocation4 + $0x1b8] sm:$0xff]
    %v108 = vld [vmem:[#allocation4 + $0x1c0] sm:$0xff]
    %v109 = vld [vmem:[#allocation4 + $0x1c8] sm:$0xff]
    %v110 = vld [vmem:[#allocation4 + $0x1d0] sm:$0xff]
    %v111 = vld [vmem:[#allocation4 + $0x1d8] sm:$0xff]
    %v112 = vld [vmem:[#allocation4 + $0x1e0] sm:$0xff]
    %v113 = vld [vmem:[#allocation4 + $0x1e8] sm:$0xff]
    %v114 = vld [vmem:[#allocation4 + $0x1f0] sm:$0xff]
    %v115 = vld [vmem:[#allocation4 + $0x1f8] sm:$0xff]
    %v116 = vmul.f32 %v52, %v52
    %v117 = vmul.f32 %v53, %v53
    %v118 = vmul.f32 %v54, %v54
    %v119 = vmul.f32 %v55, %v55
    %v120 = vmul.f32 %v56, %v56
    %v121 = vmul.f32 %v57, %v57
    %v122 = vmul.f32 %v58, %v58
    %v123 = vmul.f32 %v59, %v59
    %v124 = vmul.f32 %v60, %v60
    %v125 = vmul.f32 %v61, %v61
    %v126 = vmul.f32 %v62, %v62
    %v127 = vmul.f32 %v63, %v63
    %v128 = vmul.f32 %v64, %v64
    %v129 = vmul.f32 %v65, %v65
    %v130 = vmul.f32 %v66, %v66
    %v131 = vmul.f32 %v67, %v67
    %v132 = vmul.f32 %v68, %v68
    %v133 = vmul.f32 %v69, %v69
    %v134 = vmul.f32 %v70, %v70
    %v135 = vmul.f32 %v71, %v71
    %v136 = vmul.f32 %v72, %v72
    %v137 = vmul.f32 %v73, %v73
    %v138 = vmul.f32 %v74, %v74
    %v139 = vmul.f32 %v75, %v75
    %v140 = vmul.f32 %v76, %v76
    %v141 = vmul.f32 %v77, %v77
    %v142 = vmul.f32 %v78, %v78
    %v143 = vmul.f32 %v79, %v79
    %v144 = vmul.f32 %v80, %v80
    %v145 = vmul.f32 %v81, %v81
    %v146 = vmul.f32 %v82, %v82
    %v147 = vmul.f32 %v83, %v83
    %v148 = vmul.f32 %v84, %v84
    %v149 = vmul.f32 %v85, %v85
    %v150 = vmul.f32 %v86, %v86
    %v151 = vmul.f32 %v87, %v87
    %v152 = vmul.f32 %v88, %v88
    %v153 = vmul.f32 %v89, %v89
    %v154 = vmul.f32 %v90, %v90
    %v155 = vmul.f32 %v91, %v91
    %v156 = vmul.f32 %v92, %v92
    %v157 = vmul.f32 %v93, %v93
    %v158 = vmul.f32 %v94, %v94
    %v159 = vmul.f32 %v95, %v95
    %v160 = vmul.f32 %v96, %v96
    %v161 = vmul.f32 %v97, %v97
    %v162 = vmul.f32 %v98, %v98
    %v163 = vmul.f32 %v99, %v99
    %v164 = vmul.f32 %v100, %v100
    %v165 = vmul.f32 %v101, %v101
    %v166 = vmul.f32 %v102, %v102
    %v167 = vmul.f32 %v103, %v103
    %v168 = vmul.f32 %v104, %v104
    %v169 = vmul.f32 %v105, %v105
    %v170 = vmul.f32 %v106, %v106
    %v171 = vmul.f32 %v107, %v107
    %v172 = vmul.f32 %v108, %v108
    %v173 = vmul.f32 %v109, %v109
    %v174 = vmul.f32 %v110, %v110
    %v175 = vmul.f32 %v111, %v111
    %v176 = vmul.f32 %v112, %v112
    %v177 = vmul.f32 %v113, %v113
    %v178 = vmul.f32 %v114, %v114
    %v179 = vmul.f32 %v115, %v115
    %v180 = vld [vmem:[#allocation7] sm:$0xff]
    %v181 = vld [vmem:[#allocation7 + $0x8] sm:$0xff]
    %v182 = vld [vmem:[#allocation7 + $0x10] sm:$0xff]
    %v183 = vld [vmem:[#allocation7 + $0x18] sm:$0xff]
    %v184 = vld [vmem:[#allocation7 + $0x20] sm:$0xff]
    %v185 = vld [vmem:[#allocation7 + $0x28] sm:$0xff]
    %v186 = vld [vmem:[#allocation7 + $0x30] sm:$0xff]
    %v187 = vld [vmem:[#allocation7 + $0x38] sm:$0xff]
    %v188 = vld [vmem:[#allocation7 + $0x40] sm:$0xff]
    %v189 = vld [vmem:[#allocation7 + $0x48] sm:$0xff]
    %v190 = vld [vmem:[#allocation7 + $0x50] sm:$0xff]
    %v191 = vld [vmem:[#allocation7 + $0x58] sm:$0xff]
    %v192 = vld [vmem:[#allocation7 + $0x60] sm:$0xff]
    %v193 = vld [vmem:[#allocation7 + $0x68] sm:$0xff]
    %v194 = vld [vmem:[#allocation7 + $0x70] sm:$0xff]
    %v195 = vld [vmem:[#allocation7 + $0x78] sm:$0xff]
    %v196 = vld [vmem:[%s2] sm:$0x1]
    %v198 = vlaneseq
    %v199 = vshrl.u32 %v198, 7
    %v200 = vsub.s32 0, %v199
    %v201 = vrot.slane %v196, %v200
    %203 = vmatprep.subr.mxu0 0.0
    %204 = vmatpush1.msra.mxu0 %v195
    %205 = vmatprep.subr.mxu0 0.0
    %206 = vmatpush1.msra.mxu0 %v194
    %207 = vmatprep.subr.mxu0 0.0
    %208 = vmatpush1.msra.mxu0 %v193
    %209 = vmatprep.subr.mxu0 0.0
    %210 = vmatpush1.msra.mxu0 %v192
    %211 = vmatprep.subr.mxu0 0.0
    %212 = vmatpush1.msra.mxu0 %v191
    %213 = vmatprep.subr.mxu0 0.0
    %214 = vmatpush1.msra.mxu0 %v190
    %215 = vmatprep.subr.mxu0 0.0
    %216 = vmatpush1.msra.mxu0 %v189
    %217 = vmatprep.subr.mxu0 0.0
    %218 = vmatpush1.msra.mxu0 %v188
    %219 = vmatprep.subr.mxu0 0.0
    %220 = vmatpush1.msra.mxu0 %v187
    %221 = vmatprep.subr.mxu0 0.0
    %222 = vmatpush1.msra.mxu0 %v186
    %223 = vmatprep.subr.mxu0 0.0
    %224 = vmatpush1.msra.mxu0 %v185
    %225 = vmatprep.subr.mxu0 0.0
    %226 = vmatpush1.msra.mxu0 %v184
    %227 = vmatprep.subr.mxu0 0.0
    %228 = vmatpush1.msra.mxu0 %v183
    %229 = vmatprep.subr.mxu0 0.0
    %230 = vmatpush1.msra.mxu0 %v182
    %231 = vmatprep.subr.mxu0 0.0
    %232 = vmatpush1.msra.mxu0 %v181
    %233 = vmatprep.subr.mxu0 0.0
    %234 = vmatpush1.msra.mxu0 %v180
    %235 = vmatprep.subr.mxu0 0.0
    %236 = vmatpush2.msra.mxu0 0.0
    %237 = vmatprep.subr.mxu0 0.0
    %238 = vmatpush2.msra.mxu0 0.0
    %239 = vmatprep.subr.mxu0 0.0
    %240 = vmatpush2.msra.mxu0 0.0
    %241 = vmatprep.subr.mxu0 0.0
    %242 = vmatpush2.msra.mxu0 0.0
    %243 = vmatprep.subr.mxu0 0.0
    %244 = vmatpush2.msra.mxu0 0.0
    %245 = vmatprep.subr.mxu0 0.0
    %246 = vmatpush2.msra.mxu0 0.0
    %247 = vmatprep.subr.mxu0 0.0
    %248 = vmatpush2.msra.mxu0 0.0
    %249 = vmatprep.subr.mxu0 0.0
    %250 = vmatpush2.msra.mxu0 0.0
    %251 = vmatprep.subr.mxu0 0.0
    %252 = vmatpush2.msra.mxu0 0.0
    %253 = vmatprep.subr.mxu0 0.0
    %254 = vmatpush2.msra.mxu0 0.0
    %255 = vmatprep.subr.mxu0 0.0
    %256 = vmatpush2.msra.mxu0 0.0
    %257 = vmatprep.subr.mxu0 0.0
    %258 = vmatpush2.msra.mxu0 0.0
    %259 = vmatprep.subr.mxu0 0.0
    %260 = vmatpush2.msra.mxu0 0.0
    %261 = vmatprep.subr.mxu0 0.0
    %262 = vmatpush2.msra.mxu0 0.0
    %263 = vmatprep.subr.mxu0 0.0
    %264 = vmatpush2.msra.mxu0 0.0
    %265 = vmatprep.subr.mxu0 0.0
    %266 = vmatpush2.msra.mxu0 0.0
    %267 = vmatprep.mubr.f32.mxu0 0.0
    %268 = vmatmul.mubr.f32.gmra.mxu0 %v116
    %v269 = vpop.f32.mrf.mxu0
    %v270 = vadd.f32 %v201, %v269
    %v271 = vpop.f32.mrf.mxu0
    %272 = vmatprep.mubr.f32.mxu0 0.0
    %273 = vmatmul.mubr.f32.gmra.mxu0 %v117
    %v274 = vpop.f32.mrf.mxu0
    %v275 = vadd.f32 %v201, %v274
    %v276 = vpop.f32.mrf.mxu0
    %277 = vmatprep.mubr.f32.mxu0 0.0
    %278 = vmatmul.mubr.f32.gmra.mxu0 %v118
    %v279 = vpop.f32.mrf.mxu0
    %v280 = vadd.f32 %v201, %v279
    %v281 = vpop.f32.mrf.mxu0
    %282 = vmatprep.mubr.f32.mxu0 0.0
    %283 = vmatmul.mubr.f32.gmra.mxu0 %v119
    %v284 = vpop.f32.mrf.mxu0
    %v285 = vadd.f32 %v201, %v284
    %v286 = vpop.f32.mrf.mxu0
    %287 = vmatprep.mubr.f32.mxu0 0.0
    %288 = vmatmul.mubr.f32.gmra.mxu0 %v120
    %v289 = vpop.f32.mrf.mxu0
    %v290 = vadd.f32 %v201, %v289
    %v291 = vpop.f32.mrf.mxu0
    %292 = vmatprep.mubr.f32.mxu0 0.0
    %293 = vmatmul.mubr.f32.gmra.mxu0 %v121
    %v294 = vpop.f32.mrf.mxu0
    %v295 = vadd.f32 %v201, %v294
    %v296 = vpop.f32.mrf.mxu0
    %297 = vmatprep.mubr.f32.mxu0 0.0
    %298 = vmatmul.mubr.f32.gmra.mxu0 %v122
    %v299 = vpop.f32.mrf.mxu0
    %v300 = vadd.f32 %v201, %v299
    %v301 = vpop.f32.mrf.mxu0
    %302 = vmatprep.mubr.f32.mxu0 0.0
    %303 = vmatmul.mubr.f32.gmra.mxu0 %v123
    %v304 = vpop.f32.mrf.mxu0
    %v305 = vadd.f32 %v201, %v304
    %v306 = vpop.f32.mrf.mxu0
    %307 = vmatprep.mubr.f32.mxu0 0.0
    %308 = vmatmul.mubr.f32.gmra.mxu0 %v124
    %v309 = vpop.f32.mrf.mxu0
    %v310 = vadd.f32 %v201, %v309
    %v311 = vpop.f32.mrf.mxu0
    %312 = vmatprep.mubr.f32.mxu0 0.0
    %313 = vmatmul.mubr.f32.gmra.mxu0 %v125
    %v314 = vpop.f32.mrf.mxu0
    %v315 = vadd.f32 %v201, %v314
    %v316 = vpop.f32.mrf.mxu0
    %317 = vmatprep.mubr.f32.mxu0 0.0
    %318 = vmatmul.mubr.f32.gmra.mxu0 %v126
    %v319 = vpop.f32.mrf.mxu0
    %v320 = vadd.f32 %v201, %v319
    %v321 = vpop.f32.mrf.mxu0
    %322 = vmatprep.mubr.f32.mxu0 0.0
    %323 = vmatmul.mubr.f32.gmra.mxu0 %v127
    %v324 = vpop.f32.mrf.mxu0
    %v325 = vadd.f32 %v201, %v324
    %v326 = vpop.f32.mrf.mxu0
    %327 = vmatprep.mubr.f32.mxu0 0.0
    %328 = vmatmul.mubr.f32.gmra.mxu0 %v128
    %v329 = vpop.f32.mrf.mxu0
    %v330 = vadd.f32 %v201, %v329
    %v331 = vpop.f32.mrf.mxu0
    %332 = vmatprep.mubr.f32.mxu0 0.0
    %333 = vmatmul.mubr.f32.gmra.mxu0 %v129
    %v334 = vpop.f32.mrf.mxu0
    %v335 = vadd.f32 %v201, %v334
    %v336 = vpop.f32.mrf.mxu0
    %337 = vmatprep.mubr.f32.mxu0 0.0
    %338 = vmatmul.mubr.f32.gmra.mxu0 %v130
    %v339 = vpop.f32.mrf.mxu0
    %v340 = vadd.f32 %v201, %v339
    %v341 = vpop.f32.mrf.mxu0
    %342 = vmatprep.mubr.f32.mxu0 0.0
    %343 = vmatmul.mubr.f32.gmra.mxu0 %v131
    %v344 = vpop.f32.mrf.mxu0
    %v345 = vadd.f32 %v201, %v344
    %v346 = vpop.f32.mrf.mxu0
    %347 = vmatprep.mubr.f32.mxu0 0.0
    %348 = vmatmul.mubr.f32.gmra.mxu0 %v132
    %v349 = vpop.f32.mrf.mxu0
    %v350 = vadd.f32 %v201, %v349
    %v351 = vpop.f32.mrf.mxu0
    %352 = vmatprep.mubr.f32.mxu0 0.0
    %353 = vmatmul.mubr.f32.gmra.mxu0 %v133
    %v354 = vpop.f32.mrf.mxu0
    %v355 = vadd.f32 %v201, %v354
    %v356 = vpop.f32.mrf.mxu0
    %357 = vmatprep.mubr.f32.mxu0 0.0
    %358 = vmatmul.mubr.f32.gmra.mxu0 %v134
    %v359 = vpop.f32.mrf.mxu0
    %v360 = vadd.f32 %v201, %v359
    %v361 = vpop.f32.mrf.mxu0
    %362 = vmatprep.mubr.f32.mxu0 0.0
    %363 = vmatmul.mubr.f32.gmra.mxu0 %v135
    %v364 = vpop.f32.mrf.mxu0
    %v365 = vadd.f32 %v201, %v364
    %v366 = vpop.f32.mrf.mxu0
    %367 = vmatprep.mubr.f32.mxu0 0.0
    %368 = vmatmul.mubr.f32.gmra.mxu0 %v136
    %v369 = vpop.f32.mrf.mxu0
    %v370 = vadd.f32 %v201, %v369
    %v371 = vpop.f32.mrf.mxu0
    %372 = vmatprep.mubr.f32.mxu0 0.0
    %373 = vmatmul.mubr.f32.gmra.mxu0 %v137
    %v374 = vpop.f32.mrf.mxu0
    %v375 = vadd.f32 %v201, %v374
    %v376 = vpop.f32.mrf.mxu0
    %377 = vmatprep.mubr.f32.mxu0 0.0
    %378 = vmatmul.mubr.f32.gmra.mxu0 %v138
    %v379 = vpop.f32.mrf.mxu0
    %v380 = vadd.f32 %v201, %v379
    %v381 = vpop.f32.mrf.mxu0
    %382 = vmatprep.mubr.f32.mxu0 0.0
    %383 = vmatmul.mubr.f32.gmra.mxu0 %v139
    %v384 = vpop.f32.mrf.mxu0
    %v385 = vadd.f32 %v201, %v384
    %v386 = vpop.f32.mrf.mxu0
    %387 = vmatprep.mubr.f32.mxu0 0.0
    %388 = vmatmul.mubr.f32.gmra.mxu0 %v140
    %v389 = vpop.f32.mrf.mxu0
    %v390 = vadd.f32 %v201, %v389
    %v391 = vpop.f32.mrf.mxu0
    %392 = vmatprep.mubr.f32.mxu0 0.0
    %393 = vmatmul.mubr.f32.gmra.mxu0 %v141
    %v394 = vpop.f32.mrf.mxu0
    %v395 = vadd.f32 %v201, %v394
    %v396 = vpop.f32.mrf.mxu0
    %397 = vmatprep.mubr.f32.mxu0 0.0
    %398 = vmatmul.mubr.f32.gmra.mxu0 %v142
    %v399 = vpop.f32.mrf.mxu0
    %v400 = vadd.f32 %v201, %v399
    %v401 = vpop.f32.mrf.mxu0
    %402 = vmatprep.mubr.f32.mxu0 0.0
    %403 = vmatmul.mubr.f32.gmra.mxu0 %v143
    %v404 = vpop.f32.mrf.mxu0
    %v405 = vadd.f32 %v201, %v404
    %v406 = vpop.f32.mrf.mxu0
    %407 = vmatprep.mubr.f32.mxu0 0.0
    %408 = vmatmul.mubr.f32.gmra.mxu0 %v144
    %v409 = vpop.f32.mrf.mxu0
    %v410 = vadd.f32 %v201, %v409
    %v411 = vpop.f32.mrf.mxu0
    %412 = vmatprep.mubr.f32.mxu0 0.0
    %413 = vmatmul.mubr.f32.gmra.mxu0 %v145
    %v414 = vpop.f32.mrf.mxu0
    %v415 = vadd.f32 %v201, %v414
    %v416 = vpop.f32.mrf.mxu0
    %417 = vmatprep.mubr.f32.mxu0 0.0
    %418 = vmatmul.mubr.f32.gmra.mxu0 %v146
    %v419 = vpop.f32.mrf.mxu0
    %v420 = vadd.f32 %v201, %v419
    %v421 = vpop.f32.mrf.mxu0
    %422 = vmatprep.mubr.f32.mxu0 0.0
    %423 = vmatmul.mubr.f32.gmra.mxu0 %v147
    %v424 = vpop.f32.mrf.mxu0
    %v425 = vadd.f32 %v201, %v424
    %v426 = vpop.f32.mrf.mxu0
    %427 = vmatprep.mubr.f32.mxu0 0.0
    %428 = vmatmul.mubr.f32.gmra.mxu0 %v148
    %v429 = vpop.f32.mrf.mxu0
    %v430 = vadd.f32 %v201, %v429
    %v431 = vpop.f32.mrf.mxu0
    %432 = vmatprep.mubr.f32.mxu0 0.0
    %433 = vmatmul.mubr.f32.gmra.mxu0 %v149
    %v434 = vpop.f32.mrf.mxu0
    %v435 = vadd.f32 %v201, %v434
    %v436 = vpop.f32.mrf.mxu0
    %437 = vmatprep.mubr.f32.mxu0 0.0
    %438 = vmatmul.mubr.f32.gmra.mxu0 %v150
    %v439 = vpop.f32.mrf.mxu0
    %v440 = vadd.f32 %v201, %v439
    %v441 = vpop.f32.mrf.mxu0
    %442 = vmatprep.mubr.f32.mxu0 0.0
    %443 = vmatmul.mubr.f32.gmra.mxu0 %v151
    %v444 = vpop.f32.mrf.mxu0
    %v445 = vadd.f32 %v201, %v444
    %v446 = vpop.f32.mrf.mxu0
    %447 = vmatprep.mubr.f32.mxu0 0.0
    %448 = vmatmul.mubr.f32.gmra.mxu0 %v152
    %v449 = vpop.f32.mrf.mxu0
    %v450 = vadd.f32 %v201, %v449
    %v451 = vpop.f32.mrf.mxu0
    %452 = vmatprep.mubr.f32.mxu0 0.0
    %453 = vmatmul.mubr.f32.gmra.mxu0 %v153
    %v454 = vpop.f32.mrf.mxu0
    %v455 = vadd.f32 %v201, %v454
    %v456 = vpop.f32.mrf.mxu0
    %457 = vmatprep.mubr.f32.mxu0 0.0
    %458 = vmatmul.mubr.f32.gmra.mxu0 %v154
    %v459 = vpop.f32.mrf.mxu0
    %v460 = vadd.f32 %v201, %v459
    %v461 = vpop.f32.mrf.mxu0
    %462 = vmatprep.mubr.f32.mxu0 0.0
    %463 = vmatmul.mubr.f32.gmra.mxu0 %v155
    %v464 = vpop.f32.mrf.mxu0
    %v465 = vadd.f32 %v201, %v464
    %v466 = vpop.f32.mrf.mxu0
    %467 = vmatprep.mubr.f32.mxu0 0.0
    %468 = vmatmul.mubr.f32.gmra.mxu0 %v156
    %v469 = vpop.f32.mrf.mxu0
    %v470 = vadd.f32 %v201, %v469
    %v471 = vpop.f32.mrf.mxu0
    %472 = vmatprep.mubr.f32.mxu0 0.0
    %473 = vmatmul.mubr.f32.gmra.mxu0 %v157
    %v474 = vpop.f32.mrf.mxu0
    %v475 = vadd.f32 %v201, %v474
    %v476 = vpop.f32.mrf.mxu0
    %477 = vmatprep.mubr.f32.mxu0 0.0
    %478 = vmatmul.mubr.f32.gmra.mxu0 %v158
    %v479 = vpop.f32.mrf.mxu0
    %v480 = vadd.f32 %v201, %v479
    %v481 = vpop.f32.mrf.mxu0
    %482 = vmatprep.mubr.f32.mxu0 0.0
    %483 = vmatmul.mubr.f32.gmra.mxu0 %v159
    %v484 = vpop.f32.mrf.mxu0
    %v485 = vadd.f32 %v201, %v484
    %v486 = vpop.f32.mrf.mxu0
    %487 = vmatprep.mubr.f32.mxu0 0.0
    %488 = vmatmul.mubr.f32.gmra.mxu0 %v160
    %v489 = vpop.f32.mrf.mxu0
    %v490 = vadd.f32 %v201, %v489
    %v491 = vpop.f32.mrf.mxu0
    %492 = vmatprep.mubr.f32.mxu0 0.0
    %493 = vmatmul.mubr.f32.gmra.mxu0 %v161
    %v494 = vpop.f32.mrf.mxu0
    %v495 = vadd.f32 %v201, %v494
    %v496 = vpop.f32.mrf.mxu0
    %497 = vmatprep.mubr.f32.mxu0 0.0
    %498 = vmatmul.mubr.f32.gmra.mxu0 %v162
    %v499 = vpop.f32.mrf.mxu0
    %v500 = vadd.f32 %v201, %v499
    %v501 = vpop.f32.mrf.mxu0
    %502 = vmatprep.mubr.f32.mxu0 0.0
    %503 = vmatmul.mubr.f32.gmra.mxu0 %v163
    %v504 = vpop.f32.mrf.mxu0
    %v505 = vadd.f32 %v201, %v504
    %v506 = vpop.f32.mrf.mxu0
    %507 = vmatprep.mubr.f32.mxu0 0.0
    %508 = vmatmul.mubr.f32.gmra.mxu0 %v164
    %v509 = vpop.f32.mrf.mxu0
    %v510 = vadd.f32 %v201, %v509
    %v511 = vpop.f32.mrf.mxu0
    %512 = vmatprep.mubr.f32.mxu0 0.0
    %513 = vmatmul.mubr.f32.gmra.mxu0 %v165
    %v514 = vpop.f32.mrf.mxu0
    %v515 = vadd.f32 %v201, %v514
    %v516 = vpop.f32.mrf.mxu0
    %517 = vmatprep.mubr.f32.mxu0 0.0
    %518 = vmatmul.mubr.f32.gmra.mxu0 %v166
    %v519 = vpop.f32.mrf.mxu0
    %v520 = vadd.f32 %v201, %v519
    %v521 = vpop.f32.mrf.mxu0
    %522 = vmatprep.mubr.f32.mxu0 0.0
    %523 = vmatmul.mubr.f32.gmra.mxu0 %v167
    %v524 = vpop.f32.mrf.mxu0
    %v525 = vadd.f32 %v201, %v524
    %v526 = vpop.f32.mrf.mxu0
    %527 = vmatprep.mubr.f32.mxu0 0.0
    %528 = vmatmul.mubr.f32.gmra.mxu0 %v168
    %v529 = vpop.f32.mrf.mxu0
    %v530 = vadd.f32 %v201, %v529
    %v531 = vpop.f32.mrf.mxu0
    %532 = vmatprep.mubr.f32.mxu0 0.0
    %533 = vmatmul.mubr.f32.gmra.mxu0 %v169
    %v534 = vpop.f32.mrf.mxu0
    %v535 = vadd.f32 %v201, %v534
    %v536 = vpop.f32.mrf.mxu0
    %537 = vmatprep.mubr.f32.mxu0 0.0
    %538 = vmatmul.mubr.f32.gmra.mxu0 %v170
    %v539 = vpop.f32.mrf.mxu0
    %v540 = vadd.f32 %v201, %v539
    %v541 = vpop.f32.mrf.mxu0
    %542 = vmatprep.mubr.f32.mxu0 0.0
    %543 = vmatmul.mubr.f32.gmra.mxu0 %v171
    %v544 = vpop.f32.mrf.mxu0
    %v545 = vadd.f32 %v201, %v544
    %v546 = vpop.f32.mrf.mxu0
    %547 = vmatprep.mubr.f32.mxu0 0.0
    %548 = vmatmul.mubr.f32.gmra.mxu0 %v172
    %v549 = vpop.f32.mrf.mxu0
    %v550 = vadd.f32 %v201, %v549
    %v551 = vpop.f32.mrf.mxu0
    %552 = vmatprep.mubr.f32.mxu0 0.0
    %553 = vmatmul.mubr.f32.gmra.mxu0 %v173
    %v554 = vpop.f32.mrf.mxu0
    %v555 = vadd.f32 %v201, %v554
    %v556 = vpop.f32.mrf.mxu0
    %557 = vmatprep.mubr.f32.mxu0 0.0
    %558 = vmatmul.mubr.f32.gmra.mxu0 %v174
    %v559 = vpop.f32.mrf.mxu0
    %v560 = vadd.f32 %v201, %v559
    %v561 = vpop.f32.mrf.mxu0
    %562 = vmatprep.mubr.f32.mxu0 0.0
    %563 = vmatmul.mubr.f32.gmra.mxu0 %v175
    %v564 = vpop.f32.mrf.mxu0
    %v565 = vadd.f32 %v201, %v564
    %v566 = vpop.f32.mrf.mxu0
    %567 = vmatprep.mubr.f32.mxu0 0.0
    %568 = vmatmul.mubr.f32.gmra.mxu0 %v176
    %v569 = vpop.f32.mrf.mxu0
    %v570 = vadd.f32 %v201, %v569
    %v571 = vpop.f32.mrf.mxu0
    %572 = vmatprep.mubr.f32.mxu0 0.0
    %573 = vmatmul.mubr.f32.gmra.mxu0 %v177
    %v574 = vpop.f32.mrf.mxu0
    %v575 = vadd.f32 %v201, %v574
    %v576 = vpop.f32.mrf.mxu0
    %577 = vmatprep.mubr.f32.mxu0 0.0
    %578 = vmatmul.mubr.f32.gmra.mxu0 %v178
    %v579 = vpop.f32.mrf.mxu0
    %v580 = vadd.f32 %v201, %v579
    %v581 = vpop.f32.mrf.mxu0
    %582 = vmatprep.mubr.f32.mxu0 0.0
    %583 = vmatmul.mubr.f32.gmra.mxu0 %v179
    %v584 = vpop.f32.mrf.mxu0
    %v585 = vadd.f32 %v201, %v584
    %v586 = vpop.f32.mrf.mxu0
    %587 = vdwg.mxu0
    %v588 = vld [vmem:[#allocation2] sm:$0xff]
    %v589 = vmax.f32 %v270, %v290
    %v590 = vmax.f32 %v275, %v295
    %v591 = vmax.f32 %v280, %v300
    %v592 = vmax.f32 %v285, %v305
    %v593 = vmax.f32 %v589, %v310
    %v594 = vmax.f32 %v590, %v315
    %v595 = vmax.f32 %v591, %v320
    %v596 = vmax.f32 %v592, %v325
    %v597 = vmax.f32 %v593, %v330
    %v598 = vmax.f32 %v594, %v335
    %v599 = vmax.f32 %v595, %v340
    %v600 = vmax.f32 %v596, %v345
    %v601 = vmax.f32 %v597, %v350
    %v602 = vmax.f32 %v598, %v355
    %v603 = vmax.f32 %v599, %v360
    %v604 = vmax.f32 %v600, %v365
    %v605 = vmax.f32 %v601, %v370
    %v606 = vmax.f32 %v602, %v375
    %v607 = vmax.f32 %v603, %v380
    %v608 = vmax.f32 %v604, %v385
    %v609 = vmax.f32 %v605, %v390
    %v610 = vmax.f32 %v606, %v395
    %v611 = vmax.f32 %v607, %v400
    %v612 = vmax.f32 %v608, %v405
    %v613 = vmax.f32 %v609, %v410
    %v614 = vmax.f32 %v610, %v415
    %v615 = vmax.f32 %v611, %v420
    %v616 = vmax.f32 %v612, %v425
    %v617 = vmax.f32 %v613, %v430
    %v618 = vmax.f32 %v614, %v435
    %v619 = vmax.f32 %v615, %v440
    %v620 = vmax.f32 %v616, %v445
    %v621 = vmax.f32 %v617, %v450
    %v622 = vmax.f32 %v618, %v455
    %v623 = vmax.f32 %v619, %v460
    %v624 = vmax.f32 %v620, %v465
    %v625 = vmax.f32 %v621, %v470
    %v626 = vmax.f32 %v622, %v475
    %v627 = vmax.f32 %v623, %v480
    %v628 = vmax.f32 %v624, %v485
    %v629 = vmax.f32 %v625, %v490
    %v630 = vmax.f32 %v626, %v495
    %v631 = vmax.f32 %v627, %v500
    %v632 = vmax.f32 %v628, %v505
    %v633 = vmax.f32 %v629, %v510
    %v634 = vmax.f32 %v630, %v515
    %v635 = vmax.f32 %v631, %v520
    %v636 = vmax.f32 %v632, %v525
    %v637 = vmax.f32 %v633, %v530
    %v638 = vmax.f32 %v634, %v535
    %v639 = vmax.f32 %v635, %v540
    %v640 = vmax.f32 %v636, %v545
    %v641 = vmax.f32 %v637, %v550
    %v642 = vmax.f32 %v638, %v555
    %v643 = vmax.f32 %v639, %v560
    %v644 = vmax.f32 %v640, %v565
    %v645 = vmax.f32 %v641, %v570
    %v646 = vmax.f32 %v642, %v575
    %v647 = vmax.f32 %v643, %v580
    %v648 = vmax.f32 %v644, %v585
    %v649 = vmax.f32 %v645, %v646
    %v650 = vmax.f32 %v647, %v648
    %v651 = vmax.f32 %v649, %v650
    %v652 = vmax.f32 %v588, %v651
    %653 = vst [vmem:[#allocation2] sm:$0xff] %v652
    %v654 = vld [vmem:[#allocation3] sm:$0xff]
    %v655 = vmin.f32 %v270, %v290
    %v656 = vmin.f32 %v275, %v295
    %v657 = vmin.f32 %v280, %v300
    %v658 = vmin.f32 %v285, %v305
    %v659 = vmin.f32 %v655, %v310
    %v660 = vmin.f32 %v656, %v315
    %v661 = vmin.f32 %v657, %v320
    %v662 = vmin.f32 %v658, %v325
    %v663 = vmin.f32 %v659, %v330
    %v664 = vmin.f32 %v660, %v335
    %v665 = vmin.f32 %v661, %v340
    %v666 = vmin.f32 %v662, %v345
    %v667 = vmin.f32 %v663, %v350
    %v668 = vmin.f32 %v664, %v355
    %v669 = vmin.f32 %v665, %v360
    %v670 = vmin.f32 %v666, %v365
    %v671 = vmin.f32 %v667, %v370
    %v672 = vmin.f32 %v668, %v375
    %v673 = vmin.f32 %v669, %v380
    %v674 = vmin.f32 %v670, %v385
    %v675 = vmin.f32 %v671, %v390
    %v676 = vmin.f32 %v672, %v395
    %v677 = vmin.f32 %v673, %v400
    %v678 = vmin.f32 %v674, %v405
    %v679 = vmin.f32 %v675, %v410
    %v680 = vmin.f32 %v676, %v415
    %v681 = vmin.f32 %v677, %v420
    %v682 = vmin.f32 %v678, %v425
    %v683 = vmin.f32 %v679, %v430
    %v684 = vmin.f32 %v680, %v435
    %v685 = vmin.f32 %v681, %v440
    %v686 = vmin.f32 %v682, %v445
    %v687 = vmin.f32 %v683, %v450
    %v688 = vmin.f32 %v684, %v455
    %v689 = vmin.f32 %v685, %v460
    %v690 = vmin.f32 %v686, %v465
    %v691 = vmin.f32 %v687, %v470
    %v692 = vmin.f32 %v688, %v475
    %v693 = vmin.f32 %v689, %v480
    %v694 = vmin.f32 %v690, %v485
    %v695 = vmin.f32 %v691, %v490
    %v696 = vmin.f32 %v692, %v495
    %v697 = vmin.f32 %v693, %v500
    %v698 = vmin.f32 %v694, %v505
    %v699 = vmin.f32 %v695, %v510
    %v700 = vmin.f32 %v696, %v515
    %v701 = vmin.f32 %v697, %v520
    %v702 = vmin.f32 %v698, %v525
    %v703 = vmin.f32 %v699, %v530
    %v704 = vmin.f32 %v700, %v535
    %v705 = vmin.f32 %v701, %v540
    %v706 = vmin.f32 %v702, %v545
    %v707 = vmin.f32 %v703, %v550
    %v708 = vmin.f32 %v704, %v555
    %v709 = vmin.f32 %v705, %v560
    %v710 = vmin.f32 %v706, %v565
    %v711 = vmin.f32 %v707, %v570
    %v712 = vmin.f32 %v708, %v575
    %v713 = vmin.f32 %v709, %v580
    %v714 = vmin.f32 %v710, %v585
    %v715 = vmin.f32 %v711, %v712
    %v716 = vmin.f32 %v713, %v714
    %v717 = vmin.f32 %v715, %v716
    %v718 = vmin.f32 %v654, %v717
    %719 = vst [vmem:[#allocation3] sm:$0xff] %v718
    // Predicated region
    $region26: #{tpu_custom_call.1} parent=1 // pred_check
      %p720 = pneg %p46
    $region27: #{tpu_custom_call.1} parent=1 // pred_check_branch
      %722 = sbr.rel (%p720) target = $region29
    $region28: #{tpu_custom_call.1} parent=1 // pred_region
      %v723 = vld [vmem:[#allocation2] sm:$0xff]
      %v724 = vrot.slane %v723, 4
      %v725 = vmax.f32 %v723, %v724
      %v726 = vrot.slane %v725, 2
      %v727 = vmax.f32 %v725, %v726
      %v728 = vrot.slane %v727, 1
      %v729 = vmax.f32 %v727, %v728
      %730 = vst [vmem:[#allocation9] sm:$0x1] %v729
      %v731 = vld [vmem:[#allocation3] sm:$0xff]
      %v732 = vrot.slane %v731, 4
      %v733 = vmin.f32 %v731, %v732
      %v734 = vrot.slane %v733, 2
      %v735 = vmin.f32 %v733, %v734
      %v736 = vrot.slane %v735, 1
      %v737 = vmin.f32 %v735, %v736
      %738 = vst [vmem:[#allocation10] sm:$0x1] %v737
    $region29: #{tpu_custom_call.1} parent=1 // pred_fallthru
      _
    // Predicated region
    $region30: #{tpu_custom_call.1} parent=1 // pred_check
      _
    $region31: #{tpu_custom_call.1} parent=1 // pred_check_branch
      %740 = sbr.rel (0) target = $region33
    $region32: #{tpu_custom_call.1} parent=1 // pred_region
      %s742 = ssub.s32 16, 16
      %743 = vsyncadd [#allocation6], %s742
      %s745 = sshll.u32 [#allocation9], 4
      %s746 = int_to_ptr.vmem [resolvable:$true] %s745
      %748 = dma.vmem_to_hbm [thread:$0]  %s746, 16, %s3, [#allocation6]
    $region33: #{tpu_custom_call.1} parent=1 // pred_fallthru
      _
    // Predicated region
    $region34: #{tpu_custom_call.1} parent=1 // pred_check
      _
    $region35: #{tpu_custom_call.1} parent=1 // pred_check_branch
      %750 = sbr.rel (0) target = $region37
    $region36: #{tpu_custom_call.1} parent=1 // pred_region
      %s752 = ssub.s32 16, 16
      %753 = vsyncadd [#allocation11], %s752
      %s755 = sshll.u32 [#allocation10], 4
      %s756 = int_to_ptr.vmem [resolvable:$true] %s755
      %758 = dma.vmem_to_hbm [thread:$0]  %s756, 16, %s4, [#allocation11]
    $region37: #{tpu_custom_call.1} parent=1 // pred_fallthru
      _
    // Predicated region
    $region38: #{tpu_custom_call.1} parent=1 // pred_check
      _
    $region39: #{tpu_custom_call.1} parent=1 // pred_check_branch
      %760 = sbr.rel (0) target = $region41
    $region40: #{tpu_custom_call.1} parent=1 // pred_region
      %761 = dma.done [#allocation6], 16
    $region41: #{tpu_custom_call.1} parent=1 // pred_fallthru
      _
    // Predicated region
    $region42: #{tpu_custom_call.1} parent=1 // pred_check
      _
    $region43: #{tpu_custom_call.1} parent=1 // pred_check_branch
      %763 = sbr.rel (0) target = $region45
    $region44: #{tpu_custom_call.1} parent=1 // pred_region
      %764 = dma.done [#allocation11], 16
    $region45: #{tpu_custom_call.1} parent=1 // pred_fallthru
      _
    %765 = vsyncpa [#allocation5], 1
    %766 = vsyncpa [#allocation8], 1
    %767 = vsyncpa [#allocation6], 1
    %768 = vsyncpa [#allocation11], 1

</llo_original>
